<compile_context>
chip_gen: v7x
topology: tpu7x:2x2x1
jax: 0.10.0
libtpu: 0.0.40
codegen_flags: <defaults>
</compile_context>

<pallas_src>
import functools

import jax
import jax.numpy as jnp
from jax.experimental import pallas as pl
from jax.experimental.pallas import tpu as pltpu


def _round_up(x, m):
    return (x + m - 1) // m * m


def _cdiv(a, b):
    return -(-a // b)


def _vmem_capacity_bytes():
    try:
        cap = getattr(pltpu.get_tpu_info(), "vmem_capacity_bytes", None)
        if cap:
            return int(cap)
    except Exception:
        pass
    return 64 * 1024 * 1024  # conservative fallback (v7x per-TC VMEM)


def _generator_kernel(x_ref, w_ref, b_ref, scores_ref, pred_ref,
                      m_sc, l_sc, idx_sc, *rest,
                      tile_v, use_logits_scratch):
    # x_ref:      (TM, Kp)  bf16   row tile of flattened inputs (resident per i)
    # w_ref:      (Kp, TV)  bf16   vocab tile of the transposed weight
    # b_ref:      (1,  TV)  f32    vocab tile of the bias (-1e30 on padding)
    # scores_ref: (TM, TV)  f32    log-softmax scores (written in pass p==1)
    # pred_ref:   (TM, 128) i32    argmax broadcast across 128 lanes
    # m_sc/l_sc:  (TM, 1)   f32    running max / rescaled sum (m folded to
    #                              m+log(l) at the end of pass 0)
    # idx_sc:     (TM, 1)   i32    running argmax (first-occurrence tie-break)
    # rest:       () or (logits_sc,) with logits_sc: (NV, TM, TV) f32
    p = pl.program_id(1)   # 0 = statistics (+ fill logits scratch), 1 = write
    j = pl.program_id(2)   # vocab-tile index
    nv = pl.num_programs(2)

    logits_sc = rest[0] if use_logits_scratch else None

    def compute_logits():
        # MXU: bf16 operands, f32 accumulation, f32 bias add.
        return jnp.dot(x_ref[...], w_ref[...],
                       preferred_element_type=jnp.float32) + b_ref[...]

    if not use_logits_scratch:
        # 2-pass recompute variant: one matmul per grid step (both passes).
        logits_shared = compute_logits()

    @pl.when(p == 0)
    def _stats():
        logits = compute_logits() if use_logits_scratch else logits_shared
        if use_logits_scratch:
            logits_sc[j] = logits          # keep the tile for the write pass

        @pl.when(j == 0)
        def _init():
            m_sc[...] = jnp.full(m_sc.shape, -jnp.inf, dtype=m_sc.dtype)
            l_sc[...] = jnp.zeros(l_sc.shape, dtype=l_sc.dtype)
            idx_sc[...] = jnp.zeros(idx_sc.shape, dtype=idx_sc.dtype)

        tile_max = jnp.max(logits, axis=-1, keepdims=True)               # (TM,1)
        # First-occurrence argmax within this vocab tile (global column ids).
        col = jax.lax.broadcasted_iota(jnp.int32, logits.shape, 1) + j * tile_v
        big = jnp.int32(2 ** 30)
        tile_arg = jnp.min(jnp.where(logits == tile_max, col, big),
                           axis=-1, keepdims=True)                       # (TM,1)

        m_old = m_sc[...]
        m_new = jnp.maximum(m_old, tile_max)
        l_sc[...] = (l_sc[...] * jnp.exp(m_old - m_new)
                     + jnp.sum(jnp.exp(logits - m_new), axis=-1, keepdims=True))
        # Strict '>' keeps the earlier tile's index on ties (torch.max /
        # jnp.argmax first-index semantics).
        idx_sc[...] = jnp.where(tile_max > m_old, tile_arg, idx_sc[...])
        m_sc[...] = m_new

        @pl.when(j == nv - 1)
        def _fold():
            # Fold the normalizer once: scores = logits - (m + log(l)).
            m_sc[...] = m_sc[...] + jnp.log(l_sc[...])

    @pl.when(p == 1)
    def _write():
        logits = logits_sc[j] if use_logits_scratch else logits_shared
        scores_ref[...] = (logits - m_sc[...]).astype(scores_ref.dtype)

        @pl.when(j == 0)
        def _pred():
            # Lane-dense prediction write: broadcast the per-row index across
            # 128 lanes so the store is an unmasked full-lane vst.
            pred_ref[...] = jnp.broadcast_to(idx_sc[...], pred_ref.shape)


def prepare_generator_weights(weight, bias, *, max_tile_v=1024):
    """One-time weight/bias prep (do this at init, not per forward).

    weight: [V, K] (PyTorch nn.Linear layout), bias: [V].
    Returns padded [K_pad, V_pad] bf16 weight (transposed), (1, V_pad) f32 bias
    with -1e30 on padded vocab columns, plus the tiling metadata.
    """
    V, K = weight.shape
    K_pad = _round_up(K, 256)          # fill the 256-wide MXU contraction (v6e/v7x)
    # Balanced vocab tiling: zero padding when a <=max_tile_v tile divides V,
    # otherwise at most 127 extra padded columns per vocab tile.
    V128 = _round_up(V, 128)
    num_v = _cdiv(V128, max_tile_v)
    tile_v = _round_up(_cdiv(V128, num_v), 128)
    V_pad = num_v * tile_v

    w_kv = jnp.pad(jnp.asarray(weight).T.astype(jnp.bfloat16),
                   ((0, K_pad - K), (0, V_pad - V)))
    # Padded vocab columns: weight 0, bias -1e30 -> never the max, exp ~ 0.
    b_1v = jnp.pad(jnp.asarray(bias).astype(jnp.float32).reshape(1, V),
                   ((0, 0), (0, V_pad - V)), constant_values=-1e30)
    return dict(w_kv=w_kv, b_1v=b_1v, K=K, V=V, K_pad=K_pad, V_pad=V_pad,
                tile_v=tile_v, num_v=num_v)


def generator_apply(inputs, params, *, max_tile_m=1024, force_variant=None):
    """inputs: [B, S, K] f32; params: output of prepare_generator_weights.

    Returns dict(scores=[B, S, V] f32 log-probs, predictions=[B, S] int32).
    """
    B, S, K = inputs.shape
    assert K == params["K"], "input_size mismatch with prepared weights"
    V, K_pad, V_pad = params["V"], params["K_pad"], params["V_pad"]
    tile_v, num_v = params["tile_v"], params["num_v"]
    M = B * S
    M16 = _round_up(M, 16)             # bf16 sublane packing

    vmem_cap = _vmem_capacity_bytes()
    budget = int(0.70 * vmem_cap)      # leave headroom for compiler scratch

    def stream_bytes(tm):
        # Double-buffered streaming blocks + tiny per-row stats scratch.
        return (2 * tm * K_pad * 2          # x tile (bf16)
                + 2 * K_pad * tile_v * 2    # weight tile (bf16)
                + 2 * tile_v * 4            # bias tile
                + 2 * tm * tile_v * 4       # scores out tile (f32)
                + 2 * tm * 128 * 4          # predictions out tile
                + 3 * tm * 4)               # m / l / argmax scratch

    def largest_tile_m(extra_bytes_per_row):
        tm = min(max_tile_m, M16)
        while tm > 16 and stream_bytes(tm) + tm * extra_bytes_per_row > budget:
            tm -= 16
        return tm

    tm_recompute = largest_tile_m(0)
    tm_scratch = largest_tile_m(V_pad * 4)   # + full-V f32 logits scratch
    # The single-matmul (logits-in-VMEM) variant wins when its row tile is at
    # least half the recompute variant's: equal weight HBM traffic, half the
    # MXU flops.  Otherwise (e.g. v7x 64 MiB + large vocab) fall back to the
    # 2-pass recompute with a big row tile.
    if force_variant == "scratch":
        use_logits_scratch = True
    elif force_variant == "recompute":
        use_logits_scratch = False
    else:
        use_logits_scratch = (2 * tm_scratch >= tm_recompute)
    tile_m = tm_scratch if use_logits_scratch else tm_recompute

    # Balance the row tiling (overshoot < 16 rows per tile; zero when possible).
    num_m = _cdiv(M16, tile_m)
    tile_m = _round_up(_cdiv(M16, num_m), 16)
    M_pad = num_m * tile_m

    x2d = inputs.reshape(M, K).astype(jnp.bfloat16)
    if M_pad != M or K_pad != K:
        x2d = jnp.pad(x2d, ((0, M_pad - M), (0, K_pad - K)))

    w_kv, b_1v = params["w_kv"], params["b_1v"]
    weight_passes = 1 if use_logits_scratch else 2

    cost = pl.CostEstimate(
        flops=2 * weight_passes * M_pad * K_pad * V_pad,
        transcendentals=M_pad * V_pad + M_pad,          # exp sweep + final log
        bytes_accessed=(M_pad * K_pad * 2                               # x
                        + weight_passes * num_m * K_pad * V_pad * 2     # weight
                        + weight_passes * num_m * V_pad * 4             # bias
                        + M_pad * V_pad * 4                             # scores
                        + M_pad * 128 * 4),                             # preds
    )

    if use_logits_scratch:
        # Pin the weight/bias blocks to the last vocab tile during pass 1 so
        # they are NOT re-streamed (the logits come from VMEM scratch).
        w_map = lambda i, p, j: (0, j + p * (num_v - 1 - j))
    else:
        w_map = lambda i, p, j: (0, j)

    scratch_shapes = [
        pltpu.VMEM((tile_m, 1), jnp.float32),   # running max -> folded normalizer
        pltpu.VMEM((tile_m, 1), jnp.float32),   # running rescaled sum(exp)
        pltpu.VMEM((tile_m, 1), jnp.int32),     # running argmax
    ]
    if use_logits_scratch:
        scratch_shapes.append(pltpu.VMEM((num_v, tile_m, tile_v), jnp.float32))

    vmem_need = stream_bytes(tile_m) + (tile_m * V_pad * 4
                                        if use_logits_scratch else 0)
    vmem_limit = int(min(int(0.9 * vmem_cap),
                         max(vmem_need + (4 << 20), 32 << 20)))

    kernel = functools.partial(_generator_kernel, tile_v=tile_v,
                               use_logits_scratch=use_logits_scratch)

    scores_pad, preds_pad = pl.pallas_call(
        kernel,
        out_shape=(
            jax.ShapeDtypeStruct((M_pad, V_pad), jnp.float32),
            jax.ShapeDtypeStruct((M_pad, 128), jnp.int32),
        ),
        grid_spec=pltpu.PrefetchScalarGridSpec(
            num_scalar_prefetch=0,
            grid=(num_m, 2, num_v),
            in_specs=[
                # x row tile: resident across both passes and all vocab tiles.
                pl.BlockSpec((tile_m, K_pad), lambda i, p, j: (i, 0)),
                # weight / bias vocab tiles (streamed once or twice per row
                # tile depending on the variant; see w_map above).
                pl.BlockSpec((K_pad, tile_v), w_map),
                pl.BlockSpec((1, tile_v), w_map),
            ],
            out_specs=[
                # INVARIANT: scores block index is (i, p*j).  During the stats
                # pass (p == 0) the (i, 0) block stays resident *and unwritten*
                # and is only written + flushed during the write pass.  This
                # relies on the grid order (i outer, p middle, j inner); do not
                # reorder the grid or change this index_map independently.
                pl.BlockSpec((tile_m, tile_v), lambda i, p, j: (i, p * j)),
                pl.BlockSpec((tile_m, 128), lambda i, p, j: (i, 0)),
            ],
            scratch_shapes=scratch_shapes,
        ),
        compiler_params=pltpu.CompilerParams(
            dimension_semantics=("parallel", "arbitrary", "arbitrary"),
            vmem_limit_bytes=vmem_limit,
        ),
        cost_estimate=cost,
    )(x2d, w_kv, b_1v)

    scores = scores_pad if (M_pad == M and V_pad == V) else scores_pad[:M, :V]
    scores = scores.reshape(B, S, V)
    predictions = preds_pad[:M, 0].reshape(B, S)
    return dict(scores=scores, predictions=predictions)


def generator_forward(inputs, weight, bias, *, max_tile_m=1024, max_tile_v=1024):
    """Convenience wrapper (prepares the weights per call; prefer preparing
    once with prepare_generator_weights + generator_apply in real use)."""
    params = prepare_generator_weights(weight, bias, max_tile_v=max_tile_v)
    return generator_apply(inputs, params, max_tile_m=max_tile_m)


# TODO(synk): compute_loss / NLLLoss / Seq2SeqMetrics are training-side and not
# part of the forward pass; only forward (scores + predictions) is implemented.


if __name__ == "__main__":
    # Small shapes consistent with the module's forward.
    batch, seq, input_size, vocab_size = 2, 8, 32, 64

    key = jax.random.PRNGKey(0)
    k_x, k_w, k_b = jax.random.split(key, 3)

    inputs = jax.random.normal(k_x, (batch, seq, input_size), dtype=jnp.float32)
    weight = jax.random.normal(k_w, (vocab_size, input_size), dtype=jnp.float32) * 0.1
    bias = jax.random.normal(k_b, (vocab_size,), dtype=jnp.float32) * 0.1

    params = prepare_generator_weights(weight, bias)

    # Exercise both kernel variants (auto-select picks the logits-scratch one
    # at these tiny shapes; force the 2-pass recompute path as well).
    out = generator_apply(inputs, params)
    out_rc = generator_apply(inputs, params, force_variant="recompute")
    jax.block_until_ready((out, out_rc))

    # Reference in plain JAX using the same bf16-rounded operands the kernel
    # feeds the MXU (accumulation itself is f32 in both).
    x_r = inputs.reshape(-1, input_size).astype(jnp.bfloat16).astype(jnp.float32)
    w_r = weight.astype(jnp.bfloat16).astype(jnp.float32)
    logits_ref = jnp.dot(x_r, w_r.T, precision=jax.lax.Precision.HIGHEST) + bias
    scores_ref = jax.nn.log_softmax(logits_ref, axis=-1).reshape(
        batch, seq, vocab_size)
    preds_ref = jnp.argmax(scores_ref, axis=-1).astype(jnp.int32)

    for o in (out, out_rc):
        assert o["scores"].shape == (batch, seq, vocab_size)
        assert o["predictions"].shape == (batch, seq)
        assert jnp.allclose(o["scores"], scores_ref, atol=1e-4, rtol=1e-4)
        assert jnp.array_equal(o["predictions"].astype(jnp.int32), preds_ref)
        # Fused argmax must agree with argmax of the kernel's own scores.
        assert jnp.array_equal(
            o["predictions"],
            jnp.argmax(o["scores"], axis=-1).astype(o["predictions"].dtype))

    print("KERNEL_OK")
</pallas_src>

<mosaic_0001>
module attributes {stable_mosaic.version = 11 : i64} {
  func.func @_generator_kernel(%arg0: i32, %arg1: i32, %arg2: i32, %arg3: memref<16x256xbf16, #tpu.memory_space<vmem>>, %arg4: memref<256x128xbf16, #tpu.memory_space<vmem>>, %arg5: memref<1x128xf32, #tpu.memory_space<vmem>>, %arg6: memref<16x128xf32, #tpu.memory_space<vmem>>, %arg7: memref<16x128xi32, #tpu.memory_space<vmem>>, %arg8: memref<16x1xf32, #tpu.memory_space<vmem>>, %arg9: memref<16x1xf32, #tpu.memory_space<vmem>>, %arg10: memref<16x1xi32, #tpu.memory_space<vmem>>, %arg11: memref<1x16x128xf32, #tpu.memory_space<vmem>>) attributes {dimension_semantics = [#tpu.dimension_semantics<parallel>, #tpu.dimension_semantics<arbitrary>, #tpu.dimension_semantics<arbitrary>], iteration_bounds = array<i64: 1, 2, 1>, scalar_prefetch = 0 : i64, scratch_operands = 4 : i64, tpu.core_type = #tpu.core_type<tc>, window_params = [{transform_indices = @transform_0, window_bounds = array<i64: 16, 256>}, {transform_indices = @transform_1, window_bounds = array<i64: 256, 128>}, {transform_indices = @transform_2, window_bounds = array<i64: 1, 128>}, {transform_indices = @transform_3, window_bounds = array<i64: 16, 128>}, {transform_indices = @transform_4, window_bounds = array<i64: 16, 128>}]} {
    %c0_i32 = arith.constant 0 : i32
    %0 = arith.cmpi eq, %arg1, %c0_i32 : i32
    %1 = arith.extui %0 : i1 to i32
    %c0_i32_0 = arith.constant 0 : i32
    %2 = arith.cmpi ne, %1, %c0_i32_0 : i32
    scf.if %2 {
      %c0 = arith.constant 0 : index
      %c0_2 = arith.constant 0 : index
      %6 = vector.load %arg3[%c0, %c0_2] : memref<16x256xbf16, #tpu.memory_space<vmem>>, vector<16x256xbf16>
      %c0_3 = arith.constant 0 : index
      %c0_4 = arith.constant 0 : index
      %7 = vector.load %arg4[%c0_3, %c0_4] : memref<256x128xbf16, #tpu.memory_space<vmem>>, vector<256x128xbf16>
      %cst = arith.constant dense<0.000000e+00> : vector<16x128xf32>
      %8 = tpu.matmul %6, %7, %cst {dimension_numbers = #tpu.dot_dimension_numbers<[1], [0], [0], [1], [0, 0, 1, 1], [], []>} : vector<16x256xbf16>, vector<256x128xbf16>, vector<16x128xf32> -> vector<16x128xf32>
      %c0_5 = arith.constant 0 : index
      %c0_6 = arith.constant 0 : index
      %9 = vector.load %arg5[%c0_5, %c0_6] : memref<1x128xf32, #tpu.memory_space<vmem>>, vector<1x128xf32>
      %10 = vector.broadcast %9 : vector<1x128xf32> to vector<16x128xf32>
      %11 = arith.addf %8, %10 : vector<16x128xf32>
      %12 = arith.index_cast %arg2 : i32 to index
      %c0_7 = arith.constant 0 : index
      %c0_8 = arith.constant 0 : index
      %13 = vector.load %arg11[%12, %c0_7, %c0_8] : memref<1x16x128xf32, #tpu.memory_space<vmem>>, vector<1x16x128xf32>
      %14 = vector.shape_cast %13 : vector<1x16x128xf32> to vector<16x128xf32>
      %15 = vector.shape_cast %11 : vector<16x128xf32> to vector<1x16x128xf32>
      tpu.vector_store %arg11[%12, %c0_7, %c0_8], %15 {strides = array<i32>} : memref<1x16x128xf32, #tpu.memory_space<vmem>>, vector<1x16x128xf32>,
      %c0_i32_9 = arith.constant 0 : i32
      %16 = arith.cmpi eq, %arg2, %c0_i32_9 : i32
      %17 = arith.extui %16 : i1 to i32
      %c0_i32_10 = arith.constant 0 : i32
      %18 = arith.cmpi ne, %17, %c0_i32_10 : i32
      scf.if %18 {
        %cst_28 = arith.constant 0xFF800000 : f32
        %52 = vector.broadcast %cst_28 : f32 to vector<16x1xf32>
        %c0_29 = arith.constant 0 : index
        %c0_30 = arith.constant 0 : index
        %53 = vector.load %arg8[%c0_29, %c0_30] : memref<16x1xf32, #tpu.memory_space<vmem>>, vector<16x1xf32>
        tpu.vector_store %arg8[%c0_29, %c0_30], %52 {strides = array<i32>} : memref<16x1xf32, #tpu.memory_space<vmem>>, vector<16x1xf32>,
        %cst_31 = arith.constant 0.000000e+00 : f32
        %54 = vector.broadcast %cst_31 : f32 to vector<16x1xf32>
        %c0_32 = arith.constant 0 : index
        %c0_33 = arith.constant 0 : index
        %55 = vector.load %arg9[%c0_32, %c0_33] : memref<16x1xf32, #tpu.memory_space<vmem>>, vector<16x1xf32>
        tpu.vector_store %arg9[%c0_32, %c0_33], %54 {strides = array<i32>} : memref<16x1xf32, #tpu.memory_space<vmem>>, vector<16x1xf32>,
        %c0_i32_34 = arith.constant 0 : i32
        %56 = vector.broadcast %c0_i32_34 : i32 to vector<16x1xi32>
        %c0_35 = arith.constant 0 : index
        %c0_36 = arith.constant 0 : index
        %57 = vector.load %arg10[%c0_35, %c0_36] : memref<16x1xi32, #tpu.memory_space<vmem>>, vector<16x1xi32>
        tpu.vector_store %arg10[%c0_35, %c0_36], %56 {strides = array<i32>} : memref<16x1xi32, #tpu.memory_space<vmem>>, vector<16x1xi32>,
      } else {
      }
      %cst_11 = arith.constant dense<0xFF800000> : vector<16xf32>
      %19 = vector.multi_reduction <maximumf>, %11, %cst_11 [1] : vector<16x128xf32> to vector<16xf32>
      %20 = vector.shape_cast %19 : vector<16xf32> to vector<16x1xf32>
      %21 = tpu.iota {dimensions = array<i32: 1>} : vector<16x128xi32>
      %c128_i32 = arith.constant 128 : i32
      %22 = arith.muli %arg2, %c128_i32 : i32
      %23 = vector.broadcast %22 : i32 to vector<16x128xi32>
      %24 = arith.addi %21, %23 : vector<16x128xi32>
      %25 = vector.broadcast %20 : vector<16x1xf32> to vector<16x128xf32>
      %26 = arith.cmpf oeq, %11, %25 : vector<16x128xf32>
      %c1073741824_i32 = arith.constant 1073741824 : i32
      %27 = vector.broadcast %c1073741824_i32 : i32 to vector<16x128xi32>
      %28 = arith.select %26, %24, %27 : vector<16x128xi1>, vector<16x128xi32>
      %cst_12 = arith.constant dense<2147483647> : vector<16xi32>
      %29 = vector.multi_reduction <minsi>, %28, %cst_12 [1] : vector<16x128xi32> to vector<16xi32>
      %30 = vector.shape_cast %29 : vector<16xi32> to vector<16x1xi32>
      %c0_13 = arith.constant 0 : index
      %c0_14 = arith.constant 0 : index
      %31 = vector.load %arg8[%c0_13, %c0_14] : memref<16x1xf32, #tpu.memory_space<vmem>>, vector<16x1xf32>
      %32 = arith.maximumf %31, %20 : vector<16x1xf32>
      %c0_15 = arith.constant 0 : index
      %c0_16 = arith.constant 0 : index
      %33 = vector.load %arg9[%c0_15, %c0_16] : memref<16x1xf32, #tpu.memory_space<vmem>>, vector<16x1xf32>
      %34 = arith.subf %31, %32 : vector<16x1xf32>
      %35 = math.exp %34 : vector<16x1xf32>
      %36 = arith.mulf %33, %35 : vector<16x1xf32>
      %37 = vector.broadcast %32 : vector<16x1xf32> to vector<16x128xf32>
      %38 = arith.subf %11, %37 : vector<16x128xf32>
      %39 = math.exp %38 : vector<16x128xf32>
      %cst_17 = arith.constant dense<0.000000e+00> : vector<16xf32>
      %40 = vector.multi_reduction <add>, %39, %cst_17 [1] : vector<16x128xf32> to vector<16xf32>
      %41 = vector.shape_cast %40 : vector<16xf32> to vector<16x1xf32>
      %42 = arith.addf %36, %41 : vector<16x1xf32>
      %c0_18 = arith.constant 0 : index
      %c0_19 = arith.constant 0 : index
      %43 = vector.load %arg9[%c0_18, %c0_19] : memref<16x1xf32, #tpu.memory_space<vmem>>, vector<16x1xf32>
      tpu.vector_store %arg9[%c0_18, %c0_19], %42 {strides = array<i32>} : memref<16x1xf32, #tpu.memory_space<vmem>>, vector<16x1xf32>,
      %44 = arith.cmpf ogt, %20, %31 : vector<16x1xf32>
      %c0_20 = arith.constant 0 : index
      %c0_21 = arith.constant 0 : index
      %45 = vector.load %arg10[%c0_20, %c0_21] : memref<16x1xi32, #tpu.memory_space<vmem>>, vector<16x1xi32>
      %46 = arith.select %44, %30, %45 : vector<16x1xi1>, vector<16x1xi32>
      %c0_22 = arith.constant 0 : index
      %c0_23 = arith.constant 0 : index
      %47 = vector.load %arg10[%c0_22, %c0_23] : memref<16x1xi32, #tpu.memory_space<vmem>>, vector<16x1xi32>
      tpu.vector_store %arg10[%c0_22, %c0_23], %46 {strides = array<i32>} : memref<16x1xi32, #tpu.memory_space<vmem>>, vector<16x1xi32>,
      %c0_24 = arith.constant 0 : index
      %c0_25 = arith.constant 0 : index
      %48 = vector.load %arg8[%c0_24, %c0_25] : memref<16x1xf32, #tpu.memory_space<vmem>>, vector<16x1xf32>
      tpu.vector_store %arg8[%c0_24, %c0_25], %32 {strides = array<i32>} : memref<16x1xf32, #tpu.memory_space<vmem>>, vector<16x1xf32>,
      %c0_i32_26 = arith.constant 0 : i32
      %49 = arith.cmpi eq, %arg2, %c0_i32_26 : i32
      %50 = arith.extui %49 : i1 to i32
      %c0_i32_27 = arith.constant 0 : i32
      %51 = arith.cmpi ne, %50, %c0_i32_27 : i32
      scf.if %51 {
        %c0_28 = arith.constant 0 : index
        %c0_29 = arith.constant 0 : index
        %52 = vector.load %arg8[%c0_28, %c0_29] : memref<16x1xf32, #tpu.memory_space<vmem>>, vector<16x1xf32>
        %c0_30 = arith.constant 0 : index
        %c0_31 = arith.constant 0 : index
        %53 = vector.load %arg9[%c0_30, %c0_31] : memref<16x1xf32, #tpu.memory_space<vmem>>, vector<16x1xf32>
        %54 = math.log %53 : vector<16x1xf32>
        %55 = arith.addf %52, %54 : vector<16x1xf32>
        %c0_32 = arith.constant 0 : index
        %c0_33 = arith.constant 0 : index
        %56 = vector.load %arg8[%c0_32, %c0_33] : memref<16x1xf32, #tpu.memory_space<vmem>>, vector<16x1xf32>
        tpu.vector_store %arg8[%c0_32, %c0_33], %55 {strides = array<i32>} : memref<16x1xf32, #tpu.memory_space<vmem>>, vector<16x1xf32>,
      } else {
      }
    } else {
    }
    %c1_i32 = arith.constant 1 : i32
    %3 = arith.cmpi eq, %arg1, %c1_i32 : i32
    %4 = arith.extui %3 : i1 to i32
    %c0_i32_1 = arith.constant 0 : i32
    %5 = arith.cmpi ne, %4, %c0_i32_1 : i32
    scf.if %5 {
      %6 = arith.index_cast %arg2 : i32 to index
      %c0 = arith.constant 0 : index
      %c0_2 = arith.constant 0 : index
      %7 = vector.load %arg11[%6, %c0, %c0_2] : memref<1x16x128xf32, #tpu.memory_space<vmem>>, vector<1x16x128xf32>
      %8 = vector.shape_cast %7 : vector<1x16x128xf32> to vector<16x128xf32>
      %c0_3 = arith.constant 0 : index
      %c0_4 = arith.constant 0 : index
      %9 = vector.load %arg8[%c0_3, %c0_4] : memref<16x1xf32, #tpu.memory_space<vmem>>, vector<16x1xf32>
      %10 = vector.broadcast %9 : vector<16x1xf32> to vector<16x128xf32>
      %11 = arith.subf %8, %10 : vector<16x128xf32>
      %c0_5 = arith.constant 0 : index
      %c0_6 = arith.constant 0 : index
      %12 = vector.load %arg6[%c0_5, %c0_6] : memref<16x128xf32, #tpu.memory_space<vmem>>, vector<16x128xf32>
      tpu.vector_store %arg6[%c0_5, %c0_6], %11 {strides = array<i32>} : memref<16x128xf32, #tpu.memory_space<vmem>>, vector<16x128xf32>,
      %c0_i32_7 = arith.constant 0 : i32
      %13 = arith.cmpi eq, %arg2, %c0_i32_7 : i32
      %14 = arith.extui %13 : i1 to i32
      %c0_i32_8 = arith.constant 0 : i32
      %15 = arith.cmpi ne, %14, %c0_i32_8 : i32
      scf.if %15 {
        %c0_9 = arith.constant 0 : index
        %c0_10 = arith.constant 0 : index
        %16 = vector.load %arg10[%c0_9, %c0_10] : memref<16x1xi32, #tpu.memory_space<vmem>>, vector<16x1xi32>
        %17 = vector.shape_cast %16 : vector<16x1xi32> to vector<16x1xi32>
        %18 = vector.broadcast %17 : vector<16x1xi32> to vector<16x128xi32>
        %c0_11 = arith.constant 0 : index
        %c0_12 = arith.constant 0 : index
        %19 = vector.load %arg7[%c0_11, %c0_12] : memref<16x128xi32, #tpu.memory_space<vmem>>, vector<16x128xi32>
        tpu.vector_store %arg7[%c0_11, %c0_12], %18 {strides = array<i32>} : memref<16x128xi32, #tpu.memory_space<vmem>>, vector<16x128xi32>,
      } else {
      }
    } else {
    }
    return
  }
  func.func @transform_0(%arg0: i32, %arg1: i32, %arg2: i32) -> (i32, i32) {
    %c0_i32 = arith.constant 0 : i32
    %c0_i32_0 = arith.constant 0 : i32
    return %arg0, %c0_i32 : i32, i32
  }
  func.func @transform_1(%arg0: i32, %arg1: i32, %arg2: i32) -> (i32, i32) {
    %c0_i32 = arith.constant 0 : i32
    %0 = arith.subi %c0_i32, %arg2 : i32
    %1 = arith.muli %arg1, %0 : i32
    %2 = arith.addi %arg2, %1 : i32
    %c0_i32_0 = arith.constant 0 : i32
    %c0_i32_1 = arith.constant 0 : i32
    return %c0_i32_0, %2 : i32, i32
  }
  func.func @transform_2(%arg0: i32, %arg1: i32, %arg2: i32) -> (i32, i32) {
    %c0_i32 = arith.constant 0 : i32
    %0 = arith.subi %c0_i32, %arg2 : i32
    %1 = arith.muli %arg1, %0 : i32
    %2 = arith.addi %arg2, %1 : i32
    %c0_i32_0 = arith.constant 0 : i32
    %c0_i32_1 = arith.constant 0 : i32
    return %c0_i32_0, %2 : i32, i32
  }
  func.func @transform_3(%arg0: i32, %arg1: i32, %arg2: i32) -> (i32, i32) {
    %0 = arith.muli %arg1, %arg2 : i32
    %c0_i32 = arith.constant 0 : i32
    return %arg0, %0 : i32, i32
  }
  func.func @transform_4(%arg0: i32, %arg1: i32, %arg2: i32) -> (i32, i32) {
    %c0_i32 = arith.constant 0 : i32
    %c0_i32_0 = arith.constant 0 : i32
    return %arg0, %c0_i32 : i32, i32
  }
}

</mosaic_0001>

<llo_original>
// kernel: tpu_custom_call.1
$region0: #{tpu_custom_call.1}
  #allocation0 [shape = 'u32[]', space=smem, size = 0x4, offset = 0x4, fixed_abs, tag = 'smem constant byte address 0x4 - core index']
  #allocation1 [shape = 'u32[144,128]{1,0:T(1,128)}', space=vmem, size = 0x12000, scoped, tag = 'internal scratch']
  #allocation2 [shape = 'f32[16,1]{1,0:T(8,128)}', space=vmem, size = 0x2000, scoped, tag = 'scratch operand']
  #allocation3 [shape = 'f32[16,1]{1,0:T(8,128)}', space=vmem, size = 0x2000, scoped, tag = 'scratch operand']
  #allocation4 [shape = 's32[16,1]{1,0:T(8,128)}', space=vmem, size = 0x2000, scoped, tag = 'scratch operand']
  #allocation5 [shape = 'f32[1,16,128]{2,1,0:T(8,128)}', space=vmem, size = 0x2000, scoped, tag = 'scratch operand']
  %s0 = inlined_call_operand.hbm [shape: bf16[16,256], index: 0, kind: input, shape index: {}]
  %s1 = inlined_call_operand.hbm [shape: bf16[256,128], index: 1, kind: input, shape index: {}]
  %s2 = inlined_call_operand.vmem [shape: f32[1,128], index: 2, kind: input, shape index: {}]
  %s3 = inlined_call_operand.hbm [shape: f32[16,128], index: 3, kind: output, shape index: {0}]
  %s4 = inlined_call_operand.hbm [shape: s32[16,128], index: 4, kind: output, shape index: {1}]
  %5 = xla_tuple %s3, %s4
  %s6 = sld [smem:[#allocation0]]
  $region81: #{tpu_custom_call.1} parent=0
    _
  %s8 = ssub.s32 1, %s6
  %s9 = scalar_select 0, %s8, %s6
  $region1: #{tpu_custom_call.1} parent=0
    #allocation6 [shape = 'u8[8192]{0}', space=vmem, size = 0x2000, scoped, tag = 'input window, operand 0, single buffered']
    #allocation7 [shape = 's32[2]{0}', space=sflag, size = 0x8, scoped, tag = 'scoped memory for tpu_custom_call.1']
    #allocation8 [shape = 's32[2]{0}', space=sflag, size = 0x8, scoped, tag = 'scoped memory for tpu_custom_call.1']
    #allocation9 [shape = 'u8[131072]{0}', space=vmem, size = 0x20000, scoped, tag = 'input window, operand 1']
    #allocation10 [shape = 's32[2]{0}', space=sflag, size = 0x8, scoped, tag = 'scoped memory for tpu_custom_call.1']
    #allocation11 [shape = 'u8[16384]{0}', space=vmem, size = 0x4000, scoped, tag = 'output window, operand 0']
    #allocation12 [shape = 'u8[8192]{0}', space=vmem, size = 0x2000, scoped, tag = 'output window, operand 1, single buffered']
    #allocation13 [shape = 's32[1]{0}', space=sflag, size = 0x4, scoped, tag = 'scoped memory for tpu_custom_call.1']
    %10 = vsyncpa [#allocation7], 0
    %11 = vsyncpa [#allocation10], 0
    %s12 = scalar_lea.sflag [#allocation10], 1
    %13 = vsyncpa %s12, 0
    %14 = vsyncpa [#allocation8], 0
    %s15 = scalar_lea.sflag [#allocation8], 1
    %16 = vsyncpa %s15, 0
    %17 = vsyncpa [#allocation13], 0
    loop: start=0, step=1, limit=4
    $region2: #{tpu_custom_call.1} parent=1 // loop_pre_header
      _
    $region3: #{tpu_custom_call.1} parent=1 // loop_header
      %s19 = sphi 0, %s23
      %p20 = scmp.ge.s32.totalorder %s19, 4
      %s26 = sphi 0, %s45
      %s27 = sphi 0, %s41
      %s28 = sphi 0, %s37
      %s29 = sphi 0, %s26
      %s30 = sphi 0, %s27
      %s31 = sphi 0, %s28
      %s32 = sphi 0, %s29
      %s33 = sphi 0, %s30
      %s34 = sphi 0, %s31
      %s48 = sphi 0, %s50
      %s51 = sphi 0, %s48
      %s52 = sphi 0, %s51
      %s68 = sphi 0, %s52
      %s80 = sphi 0, %s82
      %s83 = sphi 0, %s80
      %s84 = sphi 0, %s83
      %s100 = sphi 0, %s84
      %s112 = sphi 0, %s114
      %s115 = sphi 0, %s112
      %s116 = sphi 0, %s115
      %s132 = sphi 0, %s116
      %s142 = sphi 0, %s144
      %s145 = sphi 0, %s142
      %s146 = sphi 0, %s145
      %s162 = sphi 0, %s146
      %s168 = sphi 0, %s170
      %s171 = sphi 0, %s168
      %s172 = sphi 0, %s171
      %s188 = sphi 0, %s172
    $region4: #{tpu_custom_call.1} parent=1 // loop_header_branch
      %22 = sbr.rel (%p20) target = $region8
    $region5: #{tpu_custom_call.1} parent=1 // loop_body
      %s24 = ssub.s32 %s19, 1
      %s25 = ssub.s32 %s19, 2
      %s35 = sadd.s32 1, %s28
      %p36 = scmp.ge.s32.totalorder %s35, 1
      %s37 = scalar_select %p36, 0, %s35
      %s38 = sadd.s32 1, %s27
      %s39 = scalar_select %p36, %s38, %s27
      %p40 = scmp.ge.s32.totalorder %s39, 2
      %s41 = scalar_select %p40, 0, %s39
      %s42 = sadd.s32 1, %s26
      %s43 = scalar_select %p40, %s42, %s26
      %p44 = scmp.ge.s32.totalorder %s43, 1
      %s45 = scalar_select %p44, 0, %s43
      %s46 = ssub.s32 %s26, %s45
      %p47 = scmp.eq.s32.totalorder %s46, 0
      %s49 = sadd.s32 %s48, 1
      %s50 = scalar_select %p47, %s48, %s49
      %p53 = pneg %p47
      %p54 = scmp.eq.s32.totalorder %s19, 1
      %p55 = por %p53, %p54
      %p56 = scmp.ne.s32.totalorder %s48, %s51
      %p57 = scmp.eq.s32.totalorder %s19, 0
      %p58 = por %p56, %p57
      %p59 = scmp.ne.s32.totalorder %s48, %s51
      %p60 = scmp.eq.s32.totalorder %s24, 1
      %p61 = por %p59, %p60
      %p62 = scmp.ne.s32.totalorder %s51, %s52
      %p63 = scmp.eq.s32.totalorder %s24, 0
      %p64 = por %p62, %p63
      %p65 = scmp.ne.s32.totalorder %s51, %s52
      %p66 = scmp.eq.s32.totalorder %s25, 1
      %p67 = por %p65, %p66
      %p69 = scmp.ne.s32.totalorder %s52, %s68
      %p70 = scmp.eq.s32.totalorder %s25, 0
      %p71 = por %p69, %p70
      %s72 = ssub.s32 0, %s28
      %s73 = smul.u32 %s27, %s72
      %s74 = sadd.s32 %s28, %s73
      %s75 = ssub.s32 0, %s37
      %s76 = smul.u32 %s41, %s75
      %s77 = sadd.s32 %s37, %s76
      %s78 = ssub.s32 %s74, %s77
      %p79 = scmp.eq.s32.totalorder %s78, 0
      %s81 = sadd.s32 %s80, 1
      %s82 = scalar_select %p79, %s80, %s81
      %p85 = pneg %p79
      %p86 = scmp.eq.s32.totalorder %s19, 1
      %p87 = por %p85, %p86
      %p88 = scmp.ne.s32.totalorder %s80, %s83
      %p89 = scmp.eq.s32.totalorder %s19, 0
      %p90 = por %p88, %p89
      %p91 = scmp.ne.s32.totalorder %s80, %s83
      %p92 = scmp.eq.s32.totalorder %s24, 1
      %p93 = por %p91, %p92
      %p94 = scmp.ne.s32.totalorder %s83, %s84
      %p95 = scmp.eq.s32.totalorder %s24, 0
      %p96 = por %p94, %p95
      %p97 = scmp.ne.s32.totalorder %s83, %s84
      %p98 = scmp.eq.s32.totalorder %s25, 1
      %p99 = por %p97, %p98
      %p101 = scmp.ne.s32.totalorder %s84, %s100
      %p102 = scmp.eq.s32.totalorder %s25, 0
      %p103 = por %p101, %p102
      %s104 = ssub.s32 0, %s28
      %s105 = smul.u32 %s27, %s104
      %s106 = sadd.s32 %s28, %s105
      %s107 = ssub.s32 0, %s37
      %s108 = smul.u32 %s41, %s107
      %s109 = sadd.s32 %s37, %s108
      %s110 = ssub.s32 %s106, %s109
      %p111 = scmp.eq.s32.totalorder %s110, 0
      %s113 = sadd.s32 %s112, 1
      %s114 = scalar_select %p111, %s112, %s113
      %p117 = pneg %p111
      %p118 = scmp.eq.s32.totalorder %s19, 1
      %p119 = por %p117, %p118
      %p120 = scmp.ne.s32.totalorder %s112, %s115
      %p121 = scmp.eq.s32.totalorder %s19, 0
      %p122 = por %p120, %p121
      %p123 = scmp.ne.s32.totalorder %s112, %s115
      %p124 = scmp.eq.s32.totalorder %s24, 1
      %p125 = por %p123, %p124
      %p126 = scmp.ne.s32.totalorder %s115, %s116
      %p127 = scmp.eq.s32.totalorder %s24, 0
      %p128 = por %p126, %p127
      %p129 = scmp.ne.s32.totalorder %s115, %s116
      %p130 = scmp.eq.s32.totalorder %s25, 1
      %p131 = por %p129, %p130
      %p133 = scmp.ne.s32.totalorder %s116, %s132
      %p134 = scmp.eq.s32.totalorder %s25, 0
      %p135 = por %p133, %p134
      %s136 = smul.u32 %s27, %s28
      %s137 = smul.u32 %s41, %s37
      %s138 = ssub.s32 %s26, %s45
      %s139 = ssub.s32 %s136, %s137
      %s140 = sor.u32 %s138, %s139
      %p141 = scmp.eq.s32.totalorder %s140, 0
      %s143 = sadd.s32 %s142, 1
      %s144 = scalar_select %p141, %s142, %s143
      %p147 = pneg %p141
      %p148 = scmp.eq.s32.totalorder %s19, 1
      %p149 = por %p147, %p148
      %p150 = scmp.ne.s32.totalorder %s142, %s145
      %p151 = scmp.eq.s32.totalorder %s19, 0
      %p152 = por %p150, %p151
      %p153 = scmp.ne.s32.totalorder %s142, %s145
      %p154 = scmp.eq.s32.totalorder %s24, 1
      %p155 = por %p153, %p154
      %p156 = scmp.ne.s32.totalorder %s145, %s146
      %p157 = scmp.eq.s32.totalorder %s24, 0
      %p158 = por %p156, %p157
      %p159 = scmp.ne.s32.totalorder %s145, %s146
      %p160 = scmp.eq.s32.totalorder %s25, 1
      %p161 = por %p159, %p160
      %p163 = scmp.ne.s32.totalorder %s146, %s162
      %p164 = scmp.eq.s32.totalorder %s25, 0
      %p165 = por %p163, %p164
      %s166 = ssub.s32 %s26, %s45
      %p167 = scmp.eq.s32.totalorder %s166, 0
      %s169 = sadd.s32 %s168, 1
      %s170 = scalar_select %p167, %s168, %s169
      %p173 = pneg %p167
      %p174 = scmp.eq.s32.totalorder %s19, 1
      %p175 = por %p173, %p174
      %p176 = scmp.ne.s32.totalorder %s168, %s171
      %p177 = scmp.eq.s32.totalorder %s19, 0
      %p178 = por %p176, %p177
      %p179 = scmp.ne.s32.totalorder %s168, %s171
      %p180 = scmp.eq.s32.totalorder %s24, 1
      %p181 = por %p179, %p180
      %p182 = scmp.ne.s32.totalorder %s171, %s172
      %p183 = scmp.eq.s32.totalorder %s24, 0
      %p184 = por %p182, %p183
      %p185 = scmp.ne.s32.totalorder %s171, %s172
      %p186 = scmp.eq.s32.totalorder %s25, 1
      %p187 = por %p185, %p186
      %p189 = scmp.ne.s32.totalorder %s172, %s188
      %p190 = scmp.eq.s32.totalorder %s25, 0
      %p191 = por %p189, %p190
      %p192 = scmp.le.s32.totalorder 1, %s19
      %p193 = scmp.lt.s32.totalorder %s19, 3
      %p194 = pnand %p192, %p193
      %p195 = pneg %p194
      // Predicated region
      $region9: #{tpu_custom_call.1} parent=5 // pred_check
        _
      $region10: #{tpu_custom_call.1} parent=5 // pred_check_branch
        %197 = sbr.rel (%p194) target = $region12
      $region11: #{tpu_custom_call.1} parent=5 // pred_region
        %s198 = ssub.s32 %s19, 1
        // Predicated region
        $region13: #{tpu_custom_call.1} parent=11 // pred_check
          %p199 = pneg %p64
        $region14: #{tpu_custom_call.1} parent=11 // pred_check_branch
          %201 = sbr.rel (%p199) target = $region16
        $region15: #{tpu_custom_call.1} parent=11 // pred_region
          %s202 = smul.u32 2, %s29
          %s204 = ssub.s32 256, 256
          %205 = vsyncadd [#allocation7], %s204
          %s206 = smul.addr %s202, 2
          %s207 = smul.addr %s206, 64
          %s208 = scalar_lea.hbm %s0, %s207
          %s209 = sshll.u32 [#allocation6], 4
          %s210 = int_to_ptr.vmem [resolvable:$true] %s209
          %215 = dma.hbm_to_vmem [thread:$0]  %s208, 256, %s210, [#allocation7], 128, 128, 8
        $region16: #{tpu_custom_call.1} parent=11 // pred_fallthru
          _
      $region12: #{tpu_custom_call.1} parent=5 // pred_fallthru
        _
      %p216 = scmp.lt.s32.totalorder %s19, 2
      // Predicated region
      $region17: #{tpu_custom_call.1} parent=5 // pred_check
        %p217 = pneg %p216
      $region18: #{tpu_custom_call.1} parent=5 // pred_check_branch
        %219 = sbr.rel (%p217) target = $region20
      $region19: #{tpu_custom_call.1} parent=5 // pred_region
        // Predicated region
        $region21: #{tpu_custom_call.1} parent=19 // pred_check
          %p220 = pneg %p90
        $region22: #{tpu_custom_call.1} parent=19 // pred_check_branch
          %222 = sbr.rel (%p220) target = $region24
        $region23: #{tpu_custom_call.1} parent=19 // pred_region
          %s223 = sand.u32 %s80, 1
          %s224 = scalar_lea.sflag [#allocation10], %s223
          %s225 = sand.u32 %s80, 1
          %s226 = smul.addr %s225, 128
          %s227 = scalar_lea.vmem [#allocation9], %s226
          %s228 = ssub.s32 0, %s28
          %s229 = smul.u32 %s27, %s228
          %s230 = sadd.s32 %s28, %s229
          %s232 = ssub.s32 2048, 2048
          %233 = vsyncadd %s224, %s232
          %s234 = smul.addr %s230, 64
          %s235 = scalar_lea.hbm %s1, %s234
          %s236 = sshll.u32 %s227, 4
          %s237 = int_to_ptr.vmem [resolvable:$true] %s236
          %242 = dma.hbm_to_vmem [thread:$0]  %s235, 2048, %s237, %s224, 64, 64, 4
        $region24: #{tpu_custom_call.1} parent=19 // pred_fallthru
          _
        // Predicated region
        $region25: #{tpu_custom_call.1} parent=19 // pred_check
          %p243 = pneg %p122
        $region26: #{tpu_custom_call.1} parent=19 // pred_check_branch
          %245 = sbr.rel (%p243) target = $region28
        $region27: #{tpu_custom_call.1} parent=19 // pred_region
          %s246 = ssub.s32 0, %s28
          %s247 = smul.u32 %s27, %s246
          %s248 = sadd.s32 %s28, %s247
          %p249 = scmp.lt.s32.totalorder %s248, 0
          %s250 = scalar_select %p249, %s248, 0
          %s251 = scalar_lea.vmem %s2, %s250
          %s252 = ssub.s32 0, %s28
          %s253 = smul.u32 %s27, %s252
          %s254 = sadd.s32 %s28, %s253
        $region28: #{tpu_custom_call.1} parent=19 // pred_fallthru
          _
      $region20: #{tpu_custom_call.1} parent=5 // pred_fallthru
        _
      %p255 = scmp.le.s32.totalorder 1, %s19
      %p256 = scmp.lt.s32.totalorder %s19, 3
      %p257 = pnand %p255, %p256
      %p258 = pneg %p257
      // Predicated region
      $region29: #{tpu_custom_call.1} parent=5 // pred_check
        _
      $region30: #{tpu_custom_call.1} parent=5 // pred_check_branch
        %260 = sbr.rel (%p257) target = $region32
      $region31: #{tpu_custom_call.1} parent=5 // pred_region
        %s261 = ssub.s32 %s19, 1
        // Predicated region
        $region33: #{tpu_custom_call.1} parent=31 // pred_check
          %p262 = pneg %p64
        $region34: #{tpu_custom_call.1} parent=31 // pred_check_branch
          %264 = sbr.rel (%p262) target = $region36
        $region35: #{tpu_custom_call.1} parent=31 // pred_region
          %265 = dma.done [#allocation7], 256
        $region36: #{tpu_custom_call.1} parent=31 // pred_fallthru
          _
        %s266 = sand.u32 %s83, 1
        %s267 = scalar_lea.sflag [#allocation10], %s266
        %s268 = sand.u32 %s83, 1
        %s269 = smul.addr %s268, 128
        %s270 = scalar_lea.vmem [#allocation9], %s269
        // Predicated region
        $region37: #{tpu_custom_call.1} parent=31 // pred_check
          %p271 = pneg %p96
        $region38: #{tpu_custom_call.1} parent=31 // pred_check_branch
          %273 = sbr.rel (%p271) target = $region40
        $region39: #{tpu_custom_call.1} parent=31 // pred_region
          %274 = dma.done %s267, 2048
        $region40: #{tpu_custom_call.1} parent=31 // pred_fallthru
          _
        %p275 = pneg %p64
        %p276 = pneg %p61
        %s277 = sand.u32 %s83, 1
        %s278 = scalar_lea.sflag [#allocation10], %s277
        %s279 = sand.u32 %s83, 1
        %s280 = smul.addr %s279, 128
        %s281 = scalar_lea.vmem [#allocation9], %s280
        %p282 = pneg %p96
        %p283 = pneg %p93
        %s284 = ssub.s32 0, %s31
        %s285 = smul.u32 %s30, %s284
        %s286 = sadd.s32 %s31, %s285
        %p287 = scmp.lt.s32.totalorder %s286, 0
        %s288 = scalar_select %p287, %s286, 0
        %s289 = scalar_lea.vmem %s2, %s288
        %p290 = pneg %p128
        %p291 = pneg %p125
        %p292 = pneg %p158
        %p293 = pneg %p155
        %s294 = sand.u32 %s145, 1
        %s295 = scalar_lea.sflag [#allocation8], %s294
        %s296 = sand.u32 %s145, 1
        %s297 = smul.addr %s296, 16
        %s298 = scalar_lea.vmem [#allocation11], %s297
        %p299 = pneg %p184
        %p300 = pneg %p181
        %s301 = smul.u32 2, %s29
        %s302 = ssub.s32 0, %s31
        %s303 = smul.u32 %s30, %s302
        %s304 = sadd.s32 %s31, %s303
        %s305 = ssub.s32 0, %s31
        %s306 = smul.u32 %s30, %s305
        %s307 = sadd.s32 %s31, %s306
        %p308 = scmp.lt.s32.totalorder %s307, 0
        %s309 = scalar_select %p308, %s307, 0
        %s310 = scalar_lea.vmem %s2, %s309
        %s311 = ssub.s32 0, %s31
        %s312 = smul.u32 %s30, %s311
        %s313 = sadd.s32 %s31, %s312
        %s314 = smul.u32 %s30, %s31
        %s315 = smul.u32 2, %s29
        %s316 = smul.u32 2, %s29
        %p318 = scmp.eq.s32.totalorder %s30, 0
        // Predicated region
        $region41: #{tpu_custom_call.1} parent=31 // pred_check
          %p319 = pneg %p318
        $region42: #{tpu_custom_call.1} parent=31 // pred_check_branch
          %321 = sbr.rel (%p319) target = $region44
        $region43: #{tpu_custom_call.1} parent=31 // pred_region
          %v322 = vld [vmem:[#allocation6] sm:$0xff]
          %v323 = vld [vmem:[#allocation6 + $0x8] sm:$0xff]
          %v324 = vld [vmem:[%s270] sm:$0xf]
          %v325 = vld [vmem:[%s270 + $0x4] sm:$0xf]
          %v326 = vld [vmem:[%s270 + $0x8] sm:$0xf]
          %v327 = vld [vmem:[%s270 + $0xc] sm:$0xf]
          %v328 = vld [vmem:[%s270 + $0x10] sm:$0xf]
          %v329 = vld [vmem:[%s270 + $0x14] sm:$0xf]
          %v330 = vld [vmem:[%s270 + $0x18] sm:$0xf]
          %v331 = vld [vmem:[%s270 + $0x1c] sm:$0xf]
          %v332 = vld [vmem:[%s270 + $0x20] sm:$0xf]
          %v333 = vld [vmem:[%s270 + $0x24] sm:$0xf]
          %v334 = vld [vmem:[%s270 + $0x28] sm:$0xf]
          %v335 = vld [vmem:[%s270 + $0x2c] sm:$0xf]
          %v336 = vld [vmem:[%s270 + $0x30] sm:$0xf]
          %v337 = vld [vmem:[%s270 + $0x34] sm:$0xf]
          %v338 = vld [vmem:[%s270 + $0x38] sm:$0xf]
          %v339 = vld [vmem:[%s270 + $0x3c] sm:$0xf]
          %v340 = vld [vmem:[%s270 + $0x40] sm:$0xf]
          %v341 = vld [vmem:[%s270 + $0x44] sm:$0xf]
          %v342 = vld [vmem:[%s270 + $0x48] sm:$0xf]
          %v343 = vld [vmem:[%s270 + $0x4c] sm:$0xf]
          %v344 = vld [vmem:[%s270 + $0x50] sm:$0xf]
          %v345 = vld [vmem:[%s270 + $0x54] sm:$0xf]
          %v346 = vld [vmem:[%s270 + $0x58] sm:$0xf]
          %v347 = vld [vmem:[%s270 + $0x5c] sm:$0xf]
          %v348 = vld [vmem:[%s270 + $0x60] sm:$0xf]
          %v349 = vld [vmem:[%s270 + $0x64] sm:$0xf]
          %v350 = vld [vmem:[%s270 + $0x68] sm:$0xf]
          %v351 = vld [vmem:[%s270 + $0x6c] sm:$0xf]
          %v352 = vld [vmem:[%s270 + $0x70] sm:$0xf]
          %v353 = vld [vmem:[%s270 + $0x74] sm:$0xf]
          %v354 = vld [vmem:[%s270 + $0x78] sm:$0xf]
          %v355 = vld [vmem:[%s270 + $0x7c] sm:$0xf]
          %v356 = vld [vmem:[%s310] sm:$0x1]
          %v358 = vlaneseq
          %v359 = vshrl.u32 %v358, 7
          %v360 = vsub.s32 0, %v359
          %v361 = vrot.slane %v356, %v360
          %v365 = vunpack.c.l.b16 %v322
          %v366 = vunpack.c.h.b16 %v322
          %v367 = vunpack.c.l.b16 %v323
          %v368 = vunpack.c.h.b16 %v323
          %v369 = vpack.c.b16 %v367, %v365
          %v370 = vpack.c.b16 %v368, %v366
          %v405 = vunpack.c.l.b16 %v324
          %v406 = vunpack.c.l.b16 %v325
          %v407 = vunpack.c.l.b16 %v326
          %v408 = vunpack.c.l.b16 %v327
          %v409 = vunpack.c.l.b16 %v328
          %v410 = vunpack.c.l.b16 %v329
          %v411 = vunpack.c.l.b16 %v330
          %v412 = vunpack.c.l.b16 %v331
          %v413 = vunpack.c.l.b16 %v332
          %v414 = vunpack.c.l.b16 %v333
          %v415 = vunpack.c.l.b16 %v334
          %v416 = vunpack.c.l.b16 %v335
          %v417 = vunpack.c.l.b16 %v336
          %v418 = vunpack.c.l.b16 %v337
          %v419 = vunpack.c.l.b16 %v338
          %v420 = vunpack.c.l.b16 %v339
          %v421 = vunpack.c.l.b16 %v340
          %v422 = vunpack.c.l.b16 %v341
          %v423 = vunpack.c.l.b16 %v342
          %v424 = vunpack.c.l.b16 %v343
          %v425 = vunpack.c.l.b16 %v344
          %v426 = vunpack.c.l.b16 %v345
          %v427 = vunpack.c.l.b16 %v346
          %v428 = vunpack.c.l.b16 %v347
          %v429 = vunpack.c.l.b16 %v348
          %v430 = vunpack.c.l.b16 %v349
          %v431 = vunpack.c.l.b16 %v350
          %v432 = vunpack.c.l.b16 %v351
          %v433 = vunpack.c.l.b16 %v352
          %v434 = vunpack.c.l.b16 %v353
          %v435 = vunpack.c.l.b16 %v354
          %v436 = vunpack.c.l.b16 %v355
          %v437 = vpack.c.b16 %v406, %v405
          %v438 = vpack.c.b16 %v408, %v407
          %v439 = vpack.c.b16 %v410, %v409
          %v440 = vpack.c.b16 %v412, %v411
          %v441 = vpack.c.b16 %v414, %v413
          %v442 = vpack.c.b16 %v416, %v415
          %v443 = vpack.c.b16 %v418, %v417
          %v444 = vpack.c.b16 %v420, %v419
          %v445 = vpack.c.b16 %v422, %v421
          %v446 = vpack.c.b16 %v424, %v423
          %v447 = vpack.c.b16 %v426, %v425
          %v448 = vpack.c.b16 %v428, %v427
          %v449 = vpack.c.b16 %v430, %v429
          %v450 = vpack.c.b16 %v432, %v431
          %v451 = vpack.c.b16 %v434, %v433
          %v452 = vpack.c.b16 %v436, %v435
          %469 = vmatprep.subr.bf16.mxu0 0
          %470 = vmatpush1.bf16.msra.mxu0 %v437
          %471 = vmatprep.subr.bf16.mxu0 0
          %472 = vmatpush1.bf16.msra.mxu0 %v438
          %473 = vmatprep.subr.bf16.mxu0 0
          %474 = vmatpush1.bf16.msra.mxu0 %v439
          %475 = vmatprep.subr.bf16.mxu0 0
          %476 = vmatpush1.bf16.msra.mxu0 %v440
          %477 = vmatprep.subr.bf16.mxu0 0
          %478 = vmatpush1.bf16.msra.mxu0 %v441
          %479 = vmatprep.subr.bf16.mxu0 0
          %480 = vmatpush1.bf16.msra.mxu0 %v442
          %481 = vmatprep.subr.bf16.mxu0 0
          %482 = vmatpush1.bf16.msra.mxu0 %v443
          %483 = vmatprep.subr.bf16.mxu0 0
          %484 = vmatpush1.bf16.msra.mxu0 %v444
          %485 = vmatprep.subr.bf16.mxu0 0
          %486 = vmatpush1.bf16.msra.mxu0 %v445
          %487 = vmatprep.subr.bf16.mxu0 0
          %488 = vmatpush1.bf16.msra.mxu0 %v446
          %489 = vmatprep.subr.bf16.mxu0 0
          %490 = vmatpush1.bf16.msra.mxu0 %v447
          %491 = vmatprep.subr.bf16.mxu0 0
          %492 = vmatpush1.bf16.msra.mxu0 %v448
          %493 = vmatprep.subr.bf16.mxu0 0
          %494 = vmatpush1.bf16.msra.mxu0 %v449
          %495 = vmatprep.subr.bf16.mxu0 0
          %496 = vmatpush1.bf16.msra.mxu0 %v450
          %497 = vmatprep.subr.bf16.mxu0 0
          %498 = vmatpush1.bf16.msra.mxu0 %v451
          %499 = vmatprep.subr.bf16.mxu0 0
          %500 = vmatpush1.bf16.msra.mxu0 %v452
          %501 = vmatprep.mubr.bf16.mxu0 %v370
          %502 = vmatmul.mubr.bf16.gmra.mrb[0].mxu0 %v369
          %v503 = vpop.f32.mrb[0].mxu0
          %v504 = vadd.f32 %v361, %v503
          %v505 = vpop.f32.mrb[0].mxu0
          %v506 = vpop.f32.mrb[0].mxu0
          %v507 = vadd.f32 %v361, %v506
          %v508 = vpop.f32.mrb[0].mxu0
          %509 = vdwg.mxu0
          %s510 = smul.u32 %s31, 16
          %s511 = scalar_lea.vmem [#allocation5], %s510
          %512 = vst [vmem:[%s511] sm:$0xff] %v504
          %513 = vst [vmem:[%s511 + $0x8] sm:$0xff] %v507
          %p514 = scmp.eq.s32.totalorder %s31, 0
          // Predicated region
          $region45: #{tpu_custom_call.1} parent=43 // pred_check
            %p515 = pneg %p514
          $region46: #{tpu_custom_call.1} parent=43 // pred_check_branch
            %517 = sbr.rel (%p515) target = $region48
          $region47: #{tpu_custom_call.1} parent=43 // pred_region
            %vm518 = vcmask 7168
            %519 = vst.msk [vmem:[#allocation2] sm:$0xff] %vm518, -inf
            %520 = vst.msk [vmem:[#allocation2 + $0x8] sm:$0xff] %vm518, -inf
            %521 = vst.msk [vmem:[#allocation3] sm:$0xff] %vm518, 0.0
            %522 = vst.msk [vmem:[#allocation3 + $0x8] sm:$0xff] %vm518, 0.0
            %523 = vst.msk [vmem:[#allocation4] sm:$0xff] %vm518, 0
            %524 = vst.msk [vmem:[#allocation4 + $0x8] sm:$0xff] %vm518, 0
          $region48: #{tpu_custom_call.1} parent=43 // pred_fallthru
            _
          %525 = vmax.xlane.f32.xlu0 %v504
          %v526 = vpop.xlane.xlu0 %525
          %527 = vmax.xlane.f32.xlu0 %v507
          %v528 = vpop.xlane.xlu0 %527
          %v529 = vlaneseq
          %v530 = vand.u32 %v529, 127
          %s531 = smul.u32 %s31, 128
          %v532 = vstv %s531
          %v533 = vadd.s32 %v530, %v532
          %vm534 = vcmp.eq.f32.partialorder %v504, %v526
          %vm535 = vcmp.eq.f32.partialorder %v507, %v528
          %v536 = vsel %vm534, %v533, 1073741824
          %v537 = vsel %vm535, %v533, 1073741824
          %v538 = vand.u32 %v536, 65535
          %v539 = vshra.s32 %v536, 16
          %v540 = vcvt.s32.f32 %v538
          %v541 = vcvt.s32.f32 %v539
          %542 = vmin.xlane.f32.xlu0 %v541
          %v543 = vpop.xlane.xlu0 %542
          %vm544 = vcmp.eq.f32.partialorder %v541, %v543
          %v545 = vsel %vm544, %v540, inf
          %546 = vmin.xlane.f32.xlu0 %v545
          %v547 = vpop.xlane.xlu0 %546
          %v548 = vcvt.f32.s32 %v547
          %v549 = vcvt.f32.s32 %v543
          %v550 = vshll.u32 %v549, 16
          %v551 = vadd.s32 %v550, %v548
          %v552 = vand.u32 %v537, 65535
          %v553 = vshra.s32 %v537, 16
          %v554 = vcvt.s32.f32 %v552
          %v555 = vcvt.s32.f32 %v553
          %556 = vmin.xlane.f32.xlu0 %v555
          %v557 = vpop.xlane.xlu0 %556
          %vm558 = vcmp.eq.f32.partialorder %v555, %v557
          %v559 = vsel %vm558, %v554, inf
          %560 = vmin.xlane.f32.xlu0 %v559
          %v561 = vpop.xlane.xlu0 %560
          %v562 = vcvt.f32.s32 %v561
          %v563 = vcvt.f32.s32 %v557
          %v564 = vshll.u32 %v563, 16
          %v565 = vadd.s32 %v564, %v562
          %v566 = vld [vmem:[#allocation2] sm:$0xff]
          %v567 = vld [vmem:[#allocation2 + $0x8] sm:$0xff]
          %v568 = vmax.f32 %v566, %v526
          %v569 = vmax.f32 %v567, %v528
          %v570 = vld [vmem:[#allocation3] sm:$0xff]
          %v571 = vld [vmem:[#allocation3 + $0x8] sm:$0xff]
          %v572 = vsub.f32 %v566, %v568
          %v573 = vsub.f32 %v567, %v569
          %v574 = vmul.f32 %v572, 1.442695
          %v575 = vpow.pop %v574
          %v576 = vmul.f32 %v573, 1.442695
          %v577 = vpow.pop %v576
          %v578 = vmul.f32 %v570, %v575
          %v579 = vmul.f32 %v571, %v577
          %581 = vset.pattern.permute.xlu0 0
          %582 = vperm.xlu0 %581, %v568
          %v583 = vpop.permute.xlu0 %582
          %586 = vset.pattern.permute.xlu0 0
          %587 = vperm.xlu0 %586, %v569
          %v588 = vpop.permute.xlu0 %587
          %v590 = vsub.f32 %v504, %v583
          %v591 = vsub.f32 %v507, %v588
          %v592 = vmul.f32 %v590, 1.442695
          %v593 = vpow.pop %v592
          %v594 = vmul.f32 %v591, 1.442695
          %v595 = vpow.pop %v594
          %596 = vadd.xlane.f32.xlu0 %v593
          %v597 = vpop.xlane.xlu0 %596
          %598 = vadd.xlane.f32.xlu0 %v595
          %v599 = vpop.xlane.xlu0 %598
          %v600 = vadd.f32 %v578, %v597
          %v601 = vadd.f32 %v579, %v599
          %vm602 = vcmask 7168
          %603 = vst.msk [vmem:[#allocation3] sm:$0xff] %vm602, %v600
          %604 = vst.msk [vmem:[#allocation3 + $0x8] sm:$0xff] %vm602, %v601
          %vm605 = vcmp.gt.f32.partialorder %v526, %v566
          %vm606 = vcmp.gt.f32.partialorder %v528, %v567
          %v607 = vld [vmem:[#allocation4] sm:$0xff]
          %v608 = vld [vmem:[#allocation4 + $0x8] sm:$0xff]
          %v609 = vsel %vm605, %v551, %v607
          %v610 = vsel %vm606, %v565, %v608
          %611 = vst.msk [vmem:[#allocation4] sm:$0xff] %vm602, %v609
          %612 = vst.msk [vmem:[#allocation4 + $0x8] sm:$0xff] %vm602, %v610
          %613 = vst.msk [vmem:[#allocation2] sm:$0xff] %vm602, %v568
          %614 = vst.msk [vmem:[#allocation2 + $0x8] sm:$0xff] %vm602, %v569
          // Predicated region
          $region49: #{tpu_custom_call.1} parent=43 // pred_check
            %p615 = pneg %p514
          $region50: #{tpu_custom_call.1} parent=43 // pred_check_branch
            %617 = sbr.rel (%p615) target = $region52
          $region51: #{tpu_custom_call.1} parent=43 // pred_region
            %v618 = vld [vmem:[#allocation2] sm:$0xff]
            %v619 = vld [vmem:[#allocation2 + $0x8] sm:$0xff]
            %v620 = vld [vmem:[#allocation3] sm:$0xff]
            %v621 = vld [vmem:[#allocation3 + $0x8] sm:$0xff]
            %v622 = vlog2.pop %v620
            %v623 = vmul.f32 %v622, 0.6931472
            %v624 = vlog2.pop %v621
            %v625 = vmul.f32 %v624, 0.6931472
            %v626 = vadd.f32 %v618, %v623
            %v627 = vadd.f32 %v619, %v625
            %628 = vst.msk [vmem:[#allocation2] sm:$0xff] %vm602, %v626
            %629 = vst.msk [vmem:[#allocation2 + $0x8] sm:$0xff] %vm602, %v627
          $region52: #{tpu_custom_call.1} parent=43 // pred_fallthru
            _
        $region44: #{tpu_custom_call.1} parent=31 // pred_fallthru
          _
        %p630 = scmp.eq.s32.totalorder %s30, 1
        // Predicated region
        $region53: #{tpu_custom_call.1} parent=31 // pred_check
          %p631 = pneg %p630
        $region54: #{tpu_custom_call.1} parent=31 // pred_check_branch
          %633 = sbr.rel (%p631) target = $region56
        $region55: #{tpu_custom_call.1} parent=31 // pred_region
          %s634 = smul.u32 %s31, 16
          %s635 = scalar_lea.vmem [#allocation5], %s634
          %v636 = vld [vmem:[%s635] sm:$0xff]
          %v637 = vld [vmem:[%s635 + $0x8] sm:$0xff]
          %v638 = vld [vmem:[#allocation2] sm:$0xff]
          %v639 = vld [vmem:[#allocation2 + $0x8] sm:$0xff]
          %641 = vset.pattern.permute.xlu0 0
          %642 = vperm.xlu0 %641, %v638
          %v643 = vpop.permute.xlu0 %642
          %646 = vset.pattern.permute.xlu0 0
          %647 = vperm.xlu0 %646, %v639
          %v648 = vpop.permute.xlu0 %647
          %v650 = vsub.f32 %v636, %v643
          %v651 = vsub.f32 %v637, %v648
          %652 = vst [vmem:[%s298] sm:$0xff] %v650
          %653 = vst [vmem:[%s298 + $0x8] sm:$0xff] %v651
          %p654 = scmp.eq.s32.totalorder %s31, 0
          // Predicated region
          $region57: #{tpu_custom_call.1} parent=55 // pred_check
            %p655 = pneg %p654
          $region58: #{tpu_custom_call.1} parent=55 // pred_check_branch
            %657 = sbr.rel (%p655) target = $region60
          $region59: #{tpu_custom_call.1} parent=55 // pred_region
            %v658 = vld [vmem:[#allocation4] sm:$0xff]
            %v659 = vld [vmem:[#allocation4 + $0x8] sm:$0xff]
            %660 = vset.pattern.permute.xlu0 0
            %661 = vperm.xlu0 %660, %v658
            %v662 = vpop.permute.xlu0 %661
            %663 = vset.pattern.permute.xlu0 0
            %664 = vperm.xlu0 %663, %v659
            %v665 = vpop.permute.xlu0 %664
            %666 = vst [vmem:[#allocation12] sm:$0xff] %v662
            %667 = vst [vmem:[#allocation12 + $0x8] sm:$0xff] %v665
          $region60: #{tpu_custom_call.1} parent=55 // pred_fallthru
            _
        $region56: #{tpu_custom_call.1} parent=31 // pred_fallthru
          _
        %s668 = sand.u32 %s145, 1
        %s669 = scalar_lea.sflag [#allocation8], %s668
        %s670 = sand.u32 %s145, 1
        %s671 = smul.addr %s670, 16
        %s672 = scalar_lea.vmem [#allocation11], %s671
        // Predicated region
        $region61: #{tpu_custom_call.1} parent=31 // pred_check
          %p673 = pneg %p155
        $region62: #{tpu_custom_call.1} parent=31 // pred_check_branch
          %675 = sbr.rel (%p673) target = $region64
        $region63: #{tpu_custom_call.1} parent=31 // pred_region
          %s676 = smul.u32 %s30, %s31
          %s677 = smul.u32 2, %s29
          %s679 = ssub.s32 256, 256
          %680 = vsyncadd %s669, %s679
          %s681 = sadd.s32 %s676, %s677
          %s682 = smul.addr %s681, 128
          %s683 = scalar_lea.hbm %s3, %s682
          %s684 = sshll.u32 %s672, 4
          %s685 = int_to_ptr.vmem [resolvable:$true] %s684
          %690 = dma.vmem_to_hbm [thread:$0]  %s685, 256, %s683, %s669, 128, 128, 8
        $region64: #{tpu_custom_call.1} parent=31 // pred_fallthru
          _
        // Predicated region
        $region65: #{tpu_custom_call.1} parent=31 // pred_check
          %p691 = pneg %p181
        $region66: #{tpu_custom_call.1} parent=31 // pred_check_branch
          %693 = sbr.rel (%p691) target = $region68
        $region67: #{tpu_custom_call.1} parent=31 // pred_region
          %s694 = smul.u32 2, %s29
          %s696 = ssub.s32 256, 256
          %697 = vsyncadd [#allocation13], %s696
          %s698 = smul.addr %s694, 128
          %s699 = scalar_lea.hbm %s4, %s698
          %s700 = sshll.u32 [#allocation12], 4
          %s701 = int_to_ptr.vmem [resolvable:$true] %s700
          %706 = dma.vmem_to_hbm [thread:$0]  %s701, 256, %s699, [#allocation13], 128, 128, 8
        $region68: #{tpu_custom_call.1} parent=31 // pred_fallthru
          _
        // Predicated region
        $region69: #{tpu_custom_call.1} parent=31 // pred_check
          %p707 = pneg %p181
        $region70: #{tpu_custom_call.1} parent=31 // pred_check_branch
          %709 = sbr.rel (%p707) target = $region72
        $region71: #{tpu_custom_call.1} parent=31 // pred_region
          %710 = dma.done [#allocation13], 256
        $region72: #{tpu_custom_call.1} parent=31 // pred_fallthru
          _
      $region32: #{tpu_custom_call.1} parent=5 // pred_fallthru
        _
      %p711 = scmp.le.s32.totalorder 2, %s19
      // Predicated region
      $region73: #{tpu_custom_call.1} parent=5 // pred_check
        %p712 = pneg %p711
      $region74: #{tpu_custom_call.1} parent=5 // pred_check_branch
        %714 = sbr.rel (%p712) target = $region76
      $region75: #{tpu_custom_call.1} parent=5 // pred_region
        %s715 = ssub.s32 %s19, 2
        // Predicated region
        $region77: #{tpu_custom_call.1} parent=75 // pred_check
          %p716 = pneg %p161
        $region78: #{tpu_custom_call.1} parent=75 // pred_check_branch
          %718 = sbr.rel (%p716) target = $region80
        $region79: #{tpu_custom_call.1} parent=75 // pred_region
          %s719 = sand.u32 %s146, 1
          %s720 = scalar_lea.sflag [#allocation8], %s719
          %s721 = sand.u32 %s146, 1
          %s722 = smul.addr %s721, 16
          %s723 = scalar_lea.vmem [#allocation11], %s722
          %724 = dma.done %s720, 256
        $region80: #{tpu_custom_call.1} parent=75 // pred_fallthru
          _
      $region76: #{tpu_custom_call.1} parent=5 // pred_fallthru
        _
    $region6: #{tpu_custom_call.1} parent=1 // loop_footer
      %s23 = sadd.s32 1, %s19
    $region7: #{tpu_custom_call.1} parent=1 // loop_footer_branch
      %18 = sbr.rel target = $region3
    $region8: #{tpu_custom_call.1} parent=1 // loop_exit
      _
    %725 = vsyncpa [#allocation7], 1
    %s726 = scalar_lea.sflag [#allocation7], 1
    %727 = vsyncpa %s726, 1
    %728 = vsyncpa [#allocation10], 1
    %s729 = scalar_lea.sflag [#allocation10], 1
    %730 = vsyncpa %s729, 1
    %731 = vsyncpa [#allocation8], 1
    %s732 = scalar_lea.sflag [#allocation8], 1
    %733 = vsyncpa %s732, 1
    %734 = vsyncpa [#allocation13], 1

</llo_original>
